<compile_context>
chip_gen: v6e
topology: v6e:2x2x1
jax: 0.10.0
libtpu: 0.0.40
codegen_flags: <defaults>
</compile_context>

<pallas_src>
import functools
import math

import jax
import jax.numpy as jnp
from jax.experimental import pallas as pl
from jax.experimental.pallas import tpu as pltpu


# ---------------------------------------------------------------------------
# Scaled-down configuration (same op structure as the PyTorch module).
# ---------------------------------------------------------------------------
BATCH = 2
ATTR_DIM = 21
FC_DIMS = [21, 32, 64, 64, 128, 128, 128, 128, 128]       # 8 x (Linear+LeakyReLU)
D_PAD = 128                                               # padded mapping width
CONST_HW = 4
CONST_CH = 128
CONV_CH = [(128, 64), (64, 64), (64, 32), (32, 32), (32, 16), (16, 16),
           (16, 8), (8, 8), (8, 8), (8, 8), (8, 4), (4, 4), (4, 4), (4, 4),
           (4, 4), (4, 4), (4, 3), (3, 3), (3, 3)]         # 19 convs
UPSAMPLE1 = (8, 8)
PAIR_UPSIZES = [(16, 16), (16, 16), (16, 16), (16, 16), (32, 32), (32, 32),
                (32, 32), (48, 32), None]                  # after conv pairs 1..9


# ---------------------------------------------------------------------------
# Pallas kernels
# ---------------------------------------------------------------------------

def _mapping_kernel(x_ref, w_ref, b_ref, o_ref):
    # x: (B, D) zero-padded attributes; w: (L, D, D); b: (L, 1, D); o: (B, D).
    # Weights / biases are zero-padded so unused lanes stay exactly zero.
    h = x_ref[...]
    for l in range(w_ref.shape[0]):
        y = jnp.dot(h, w_ref[l], preferred_element_type=jnp.float32) + b_ref[l]
        h = jnp.where(y > 0.0, y, 0.01 * y)                 # LeakyReLU(0.01)
    o_ref[...] = h


def _conv3x3_kernel(x_ref, w_ref, b_ref, o_ref, *, hb, W):
    # x_ref: (1, H+2, Cin, W+2) zero-padded input, resident across the h axis
    # w_ref: (3, 3, cblk, Cin) bf16 ; b_ref: (cblk, 1) f32
    # o_ref: (1, hb, cblk, W) -- hb output rows per grid step
    row0 = pl.program_id(2) * hb
    cblk = o_ref.shape[2]
    bias = b_ref[...]
    for r in range(hb):                                     # static unroll (hb <= 8)
        acc = jnp.zeros((cblk, W), jnp.float32)
        for dy in range(3):
            # dynamic row index handles the halo without shifted input copies
            xrow = x_ref[0, pl.ds(row0 + r + dy, 1)][0]     # (Cin, W+2) f32
            xrow = xrow.astype(jnp.bfloat16)                # MXU-boundary cast
            for dx in range(3):
                acc = acc + jnp.dot(w_ref[dy, dx], xrow[:, dx:dx + W],
                                    preferred_element_type=jnp.float32)
        o_ref[0, r] = acc + bias


def _adain_noise_kernel(x_ref, n_ref, sty_ref, o_ref):
    # x/n/o: (1, H, C, W); sty: (B, 2) f32 in SMEM = per-sample [mean, std] of
    # the latent vector.  Fused: noise add + instance-norm + style affine.
    b = pl.program_id(0)
    x = x_ref[0] + n_ref[0]                                 # (H, C, W)
    m = jnp.mean(jnp.mean(x, axis=2, keepdims=True), axis=0, keepdims=True)
    xc = x - m
    v = jnp.mean(jnp.mean(xc * xc, axis=2, keepdims=True), axis=0, keepdims=True)
    inv = jax.lax.rsqrt(v + 1e-5)
    o_ref[0] = xc * inv * sty_ref[b, 1] + sty_ref[b, 0]


# ---------------------------------------------------------------------------
# Memoized, jitted pallas_call builders (one compile per unique shape)
# ---------------------------------------------------------------------------

@functools.lru_cache(maxsize=None)
def _mapping_call(B, D, L):
    fn = pl.pallas_call(
        _mapping_kernel,
        out_shape=jax.ShapeDtypeStruct((B, D), jnp.float32),
    )
    return jax.jit(fn)


@functools.lru_cache(maxsize=None)
def _conv_call(B, H, W, Cin, Cout):
    hb = 8 if H % 8 == 0 else H                              # rows per grid step
    nh = H // hb
    cblk = 128 if (Cout > 128 and Cout % 128 == 0) else Cout
    ncb = Cout // cblk
    Hp, Wp = H + 2, W + 2
    kern = functools.partial(_conv3x3_kernel, hb=hb, W=W)
    fn = pl.pallas_call(
        kern,
        out_shape=jax.ShapeDtypeStruct((B, H, Cout, W), jnp.float32),
        grid_spec=pltpu.PrefetchScalarGridSpec(
            num_scalar_prefetch=0,
            grid=(B, ncb, nh),
            in_specs=[
                # padded input: block index constant over (c, h) -> fetched
                # once per sample and kept resident in VMEM.
                pl.BlockSpec((1, Hp, Cin, Wp), lambda b, c, h: (b, 0, 0, 0)),
                pl.BlockSpec((3, 3, cblk, Cin), lambda b, c, h: (0, 0, c, 0)),
                pl.BlockSpec((cblk, 1), lambda b, c, h: (c, 0)),
            ],
            out_specs=pl.BlockSpec((1, hb, cblk, W),
                                   lambda b, c, h: (b, h, c, 0)),
        ),
        compiler_params=pltpu.CompilerParams(
            dimension_semantics=("parallel", "arbitrary", "arbitrary")),
    )
    return jax.jit(fn)


@functools.lru_cache(maxsize=None)
def _adain_call(B, H, C, W):
    fn = pl.pallas_call(
        _adain_noise_kernel,
        out_shape=jax.ShapeDtypeStruct((B, H, C, W), jnp.float32),
        grid_spec=pltpu.PrefetchScalarGridSpec(
            num_scalar_prefetch=0,
            grid=(B,),
            in_specs=[
                pl.BlockSpec((1, H, C, W), lambda b: (b, 0, 0, 0)),
                pl.BlockSpec((1, H, C, W), lambda b: (b, 0, 0, 0)),
                pl.BlockSpec(memory_space=pltpu.MemorySpace.SMEM),   # style scalars
            ],
            out_specs=pl.BlockSpec((1, H, C, W), lambda b: (b, 0, 0, 0)),
        ),
        compiler_params=pltpu.CompilerParams(
            dimension_semantics=("parallel",)),
    )
    return jax.jit(fn)


# ---------------------------------------------------------------------------
# Layer wrappers
# ---------------------------------------------------------------------------

def mapping_network(attr, fc_w, fc_b):
    B = attr.shape[0]
    attr_pad = jnp.pad(attr, ((0, 0), (0, D_PAD - attr.shape[1])))
    return _mapping_call(B, D_PAD, fc_w.shape[0])(attr_pad, fc_w, fc_b)


def conv3x3(x, w, b):
    # x: (B, H, Cin, W) f32; w: (3, 3, Cout, Cin) f32; b: (Cout, 1) f32
    B, H, Cin, W = x.shape
    Cout = w.shape[2]
    xp = jnp.pad(x, ((0, 0), (1, 1), (0, 0), (1, 1)))   # single padded copy
    return _conv_call(B, H, W, Cin, Cout)(xp, w.astype(jnp.bfloat16), b)


def adain(x, sty, noise):
    # x/noise: (B, H, C, W); sty: (B, 2) f32 per-sample [style_mean, style_std]
    B, H, C, W = x.shape
    return _adain_call(B, H, C, W)(x, noise, sty)


def bilinear_resize(x, size):
    # TODO(synk): bilinear upsample kept in plain JAX; jax.image.resize
    # 'bilinear' matches nn.Upsample(align_corners=False) half-pixel convention.
    B, _, C, _ = x.shape
    return jax.image.resize(x, (B, size[0], C, size[1]), method="bilinear")


# ---------------------------------------------------------------------------
# Parameters (deterministic synthetic init) and forward pass
# ---------------------------------------------------------------------------

def init_params(key):
    L = len(FC_DIMS) - 1
    keys = iter(jax.random.split(key, 2 * L + 2 * len(CONV_CH) + 1))
    fc_w = jnp.zeros((L, D_PAD, D_PAD), jnp.float32)
    fc_b = jnp.zeros((L, 1, D_PAD), jnp.float32)
    for l, (din, dout) in enumerate(zip(FC_DIMS[:-1], FC_DIMS[1:])):
        bound = 1.0 / math.sqrt(din)
        w = jax.random.uniform(next(keys), (din, dout), jnp.float32, -bound, bound)
        b = jax.random.uniform(next(keys), (dout,), jnp.float32, -bound, bound)
        fc_w = fc_w.at[l, :din, :dout].set(w)
        fc_b = fc_b.at[l, 0, :dout].set(b)
    convs = []
    for cin, cout in CONV_CH:
        bound = 1.0 / math.sqrt(cin * 9)
        w = jax.random.uniform(next(keys), (3, 3, cout, cin), jnp.float32, -bound, bound)
        b = jax.random.uniform(next(keys), (cout, 1), jnp.float32, -bound, bound)
        convs.append((w, b))
    # torch.rand constant in NCHW -> (B, H, C, W) layout here.
    constant = jax.random.uniform(next(keys), (BATCH, CONST_HW, CONST_CH, CONST_HW),
                                  jnp.float32)
    return {"fc_w": fc_w, "fc_b": fc_b, "conv": convs, "constant": constant}


def nft_forward(attr, params, noise_key):
    B = attr.shape[0]
    keys = jax.random.split(noise_key, 19)

    # Mapping network: single fused Pallas kernel (weights resident in VMEM).
    latent = mapping_network(attr, params["fc_w"], params["fc_b"])     # (B, 128)
    # TODO(synk): AdaINLayer undefined in the reference; use per-sample latent
    # mean/std as the style affine (jnp.std is ddof=0, torch default is ddof=1).
    sty = jnp.stack([jnp.mean(latent, axis=1), jnp.std(latent, axis=1)],
                    axis=-1).astype(jnp.float32)                        # (B, 2)

    convs = params["conv"]

    # self.constant += GANNoise(...)  -- the noise add is fused into AdaIN.
    const = params["constant"]
    x = adain(const, sty, jax.random.uniform(keys[0], const.shape, jnp.float32))
    x = conv3x3(x, *convs[0])                       # conv1 (no noise afterwards)
    x = adain(x, sty, jnp.zeros_like(x))
    x = bilinear_resize(x, UPSAMPLE1)

    ci, ki = 1, 1
    for up in PAIR_UPSIZES:
        for _ in range(2):
            w, b = convs[ci]
            ci += 1
            x = conv3x3(x, w, b)
            noise = jax.random.uniform(keys[ki], x.shape, jnp.float32)
            ki += 1
            x = adain(x, sty, noise)                # fused noise + AdaIN
        if up is not None:
            x = bilinear_resize(x, up)
    return x                                        # (B, 48, 3, 32)


if __name__ == "__main__":
    root = jax.random.PRNGKey(0)
    pkey, nkey, xkey = jax.random.split(root, 3)
    params = init_params(pkey)
    attr = jax.random.normal(xkey, (BATCH, ATTR_DIM), jnp.float32)

    out = nft_forward(attr, params, nkey)
    out = jax.block_until_ready(out)

    # (B, H, C, W) -> NCHW, matching the torch output convention.
    out_nchw = jnp.transpose(out, (0, 2, 1, 3))
    final_h, final_w = PAIR_UPSIZES[-2]
    assert out_nchw.shape == (BATCH, 3, final_h, final_w), out_nchw.shape
    assert bool(jnp.all(jnp.isfinite(out_nchw)))
    print("KERNEL_OK")
</pallas_src>

<mosaic_0001>
module attributes {stable_mosaic.version = 11 : i64} {
  func.func @_mapping_kernel(%arg0: memref<2x128xf32, #tpu.memory_space<vmem>>, %arg1: memref<8x128x128xf32, #tpu.memory_space<vmem>>, %arg2: memref<8x1x128xf32, #tpu.memory_space<vmem>>, %arg3: memref<2x128xf32, #tpu.memory_space<vmem>>) attributes {dimension_semantics = [], scalar_prefetch = 0 : i64, scratch_operands = 0 : i64, tpu.core_type = #tpu.core_type<tc>} {
    %c0 = arith.constant 0 : index
    %c0_0 = arith.constant 0 : index
    %0 = vector.load %arg0[%c0, %c0_0] : memref<2x128xf32, #tpu.memory_space<vmem>>, vector<2x128xf32>
    %c0_1 = arith.constant 0 : index
    %c0_2 = arith.constant 0 : index
    %c0_3 = arith.constant 0 : index
    %1 = vector.load %arg1[%c0_1, %c0_2, %c0_3] : memref<8x128x128xf32, #tpu.memory_space<vmem>>, vector<1x128x128xf32>
    %2 = vector.shape_cast %1 : vector<1x128x128xf32> to vector<128x128xf32>
    %cst = arith.constant dense<0.000000e+00> : vector<2x128xf32>
    %3 = tpu.matmul %0, %2, %cst {dimension_numbers = #tpu.dot_dimension_numbers<[1], [0], [0], [1], [0, 0, 1, 1], [], []>} : vector<2x128xf32>, vector<128x128xf32>, vector<2x128xf32> -> vector<2x128xf32>
    %c0_4 = arith.constant 0 : index
    %c0_5 = arith.constant 0 : index
    %c0_6 = arith.constant 0 : index
    %4 = vector.load %arg2[%c0_4, %c0_5, %c0_6] : memref<8x1x128xf32, #tpu.memory_space<vmem>>, vector<1x1x128xf32>
    %5 = vector.shape_cast %4 : vector<1x1x128xf32> to vector<1x128xf32>
    %6 = vector.broadcast %5 : vector<1x128xf32> to vector<2x128xf32>
    %7 = arith.addf %3, %6 : vector<2x128xf32>
    %cst_7 = arith.constant 0.000000e+00 : f32
    %8 = vector.broadcast %cst_7 : f32 to vector<2x128xf32>
    %9 = arith.cmpf ogt, %7, %8 : vector<2x128xf32>
    %cst_8 = arith.constant 0.00999999977 : f32
    %10 = vector.broadcast %cst_8 : f32 to vector<2x128xf32>
    %11 = arith.mulf %10, %7 : vector<2x128xf32>
    %12 = arith.select %9, %7, %11 : vector<2x128xi1>, vector<2x128xf32>
    %c1 = arith.constant 1 : index
    %c0_9 = arith.constant 0 : index
    %c0_10 = arith.constant 0 : index
    %13 = vector.load %arg1[%c1, %c0_9, %c0_10] : memref<8x128x128xf32, #tpu.memory_space<vmem>>, vector<1x128x128xf32>
    %14 = vector.shape_cast %13 : vector<1x128x128xf32> to vector<128x128xf32>
    %cst_11 = arith.constant dense<0.000000e+00> : vector<2x128xf32>
    %15 = tpu.matmul %12, %14, %cst_11 {dimension_numbers = #tpu.dot_dimension_numbers<[1], [0], [0], [1], [0, 0, 1, 1], [], []>} : vector<2x128xf32>, vector<128x128xf32>, vector<2x128xf32> -> vector<2x128xf32>
    %c1_12 = arith.constant 1 : index
    %c0_13 = arith.constant 0 : index
    %c0_14 = arith.constant 0 : index
    %16 = vector.load %arg2[%c1_12, %c0_13, %c0_14] : memref<8x1x128xf32, #tpu.memory_space<vmem>>, vector<1x1x128xf32>
    %17 = vector.shape_cast %16 : vector<1x1x128xf32> to vector<1x128xf32>
    %18 = vector.broadcast %17 : vector<1x128xf32> to vector<2x128xf32>
    %19 = arith.addf %15, %18 : vector<2x128xf32>
    %cst_15 = arith.constant 0.000000e+00 : f32
    %20 = vector.broadcast %cst_15 : f32 to vector<2x128xf32>
    %21 = arith.cmpf ogt, %19, %20 : vector<2x128xf32>
    %cst_16 = arith.constant 0.00999999977 : f32
    %22 = vector.broadcast %cst_16 : f32 to vector<2x128xf32>
    %23 = arith.mulf %22, %19 : vector<2x128xf32>
    %24 = arith.select %21, %19, %23 : vector<2x128xi1>, vector<2x128xf32>
    %c2 = arith.constant 2 : index
    %c0_17 = arith.constant 0 : index
    %c0_18 = arith.constant 0 : index
    %25 = vector.load %arg1[%c2, %c0_17, %c0_18] : memref<8x128x128xf32, #tpu.memory_space<vmem>>, vector<1x128x128xf32>
    %26 = vector.shape_cast %25 : vector<1x128x128xf32> to vector<128x128xf32>
    %cst_19 = arith.constant dense<0.000000e+00> : vector<2x128xf32>
    %27 = tpu.matmul %24, %26, %cst_19 {dimension_numbers = #tpu.dot_dimension_numbers<[1], [0], [0], [1], [0, 0, 1, 1], [], []>} : vector<2x128xf32>, vector<128x128xf32>, vector<2x128xf32> -> vector<2x128xf32>
    %c2_20 = arith.constant 2 : index
    %c0_21 = arith.constant 0 : index
    %c0_22 = arith.constant 0 : index
    %28 = vector.load %arg2[%c2_20, %c0_21, %c0_22] : memref<8x1x128xf32, #tpu.memory_space<vmem>>, vector<1x1x128xf32>
    %29 = vector.shape_cast %28 : vector<1x1x128xf32> to vector<1x128xf32>
    %30 = vector.broadcast %29 : vector<1x128xf32> to vector<2x128xf32>
    %31 = arith.addf %27, %30 : vector<2x128xf32>
    %cst_23 = arith.constant 0.000000e+00 : f32
    %32 = vector.broadcast %cst_23 : f32 to vector<2x128xf32>
    %33 = arith.cmpf ogt, %31, %32 : vector<2x128xf32>
    %cst_24 = arith.constant 0.00999999977 : f32
    %34 = vector.broadcast %cst_24 : f32 to vector<2x128xf32>
    %35 = arith.mulf %34, %31 : vector<2x128xf32>
    %36 = arith.select %33, %31, %35 : vector<2x128xi1>, vector<2x128xf32>
    %c3 = arith.constant 3 : index
    %c0_25 = arith.constant 0 : index
    %c0_26 = arith.constant 0 : index
    %37 = vector.load %arg1[%c3, %c0_25, %c0_26] : memref<8x128x128xf32, #tpu.memory_space<vmem>>, vector<1x128x128xf32>
    %38 = vector.shape_cast %37 : vector<1x128x128xf32> to vector<128x128xf32>
    %cst_27 = arith.constant dense<0.000000e+00> : vector<2x128xf32>
    %39 = tpu.matmul %36, %38, %cst_27 {dimension_numbers = #tpu.dot_dimension_numbers<[1], [0], [0], [1], [0, 0, 1, 1], [], []>} : vector<2x128xf32>, vector<128x128xf32>, vector<2x128xf32> -> vector<2x128xf32>
    %c3_28 = arith.constant 3 : index
    %c0_29 = arith.constant 0 : index
    %c0_30 = arith.constant 0 : index
    %40 = vector.load %arg2[%c3_28, %c0_29, %c0_30] : memref<8x1x128xf32, #tpu.memory_space<vmem>>, vector<1x1x128xf32>
    %41 = vector.shape_cast %40 : vector<1x1x128xf32> to vector<1x128xf32>
    %42 = vector.broadcast %41 : vector<1x128xf32> to vector<2x128xf32>
    %43 = arith.addf %39, %42 : vector<2x128xf32>
    %cst_31 = arith.constant 0.000000e+00 : f32
    %44 = vector.broadcast %cst_31 : f32 to vector<2x128xf32>
    %45 = arith.cmpf ogt, %43, %44 : vector<2x128xf32>
    %cst_32 = arith.constant 0.00999999977 : f32
    %46 = vector.broadcast %cst_32 : f32 to vector<2x128xf32>
    %47 = arith.mulf %46, %43 : vector<2x128xf32>
    %48 = arith.select %45, %43, %47 : vector<2x128xi1>, vector<2x128xf32>
    %c4 = arith.constant 4 : index
    %c0_33 = arith.constant 0 : index
    %c0_34 = arith.constant 0 : index
    %49 = vector.load %arg1[%c4, %c0_33, %c0_34] : memref<8x128x128xf32, #tpu.memory_space<vmem>>, vector<1x128x128xf32>
    %50 = vector.shape_cast %49 : vector<1x128x128xf32> to vector<128x128xf32>
    %cst_35 = arith.constant dense<0.000000e+00> : vector<2x128xf32>
    %51 = tpu.matmul %48, %50, %cst_35 {dimension_numbers = #tpu.dot_dimension_numbers<[1], [0], [0], [1], [0, 0, 1, 1], [], []>} : vector<2x128xf32>, vector<128x128xf32>, vector<2x128xf32> -> vector<2x128xf32>
    %c4_36 = arith.constant 4 : index
    %c0_37 = arith.constant 0 : index
    %c0_38 = arith.constant 0 : index
    %52 = vector.load %arg2[%c4_36, %c0_37, %c0_38] : memref<8x1x128xf32, #tpu.memory_space<vmem>>, vector<1x1x128xf32>
    %53 = vector.shape_cast %52 : vector<1x1x128xf32> to vector<1x128xf32>
    %54 = vector.broadcast %53 : vector<1x128xf32> to vector<2x128xf32>
    %55 = arith.addf %51, %54 : vector<2x128xf32>
    %cst_39 = arith.constant 0.000000e+00 : f32
    %56 = vector.broadcast %cst_39 : f32 to vector<2x128xf32>
    %57 = arith.cmpf ogt, %55, %56 : vector<2x128xf32>
    %cst_40 = arith.constant 0.00999999977 : f32
    %58 = vector.broadcast %cst_40 : f32 to vector<2x128xf32>
    %59 = arith.mulf %58, %55 : vector<2x128xf32>
    %60 = arith.select %57, %55, %59 : vector<2x128xi1>, vector<2x128xf32>
    %c5 = arith.constant 5 : index
    %c0_41 = arith.constant 0 : index
    %c0_42 = arith.constant 0 : index
    %61 = vector.load %arg1[%c5, %c0_41, %c0_42] : memref<8x128x128xf32, #tpu.memory_space<vmem>>, vector<1x128x128xf32>
    %62 = vector.shape_cast %61 : vector<1x128x128xf32> to vector<128x128xf32>
    %cst_43 = arith.constant dense<0.000000e+00> : vector<2x128xf32>
    %63 = tpu.matmul %60, %62, %cst_43 {dimension_numbers = #tpu.dot_dimension_numbers<[1], [0], [0], [1], [0, 0, 1, 1], [], []>} : vector<2x128xf32>, vector<128x128xf32>, vector<2x128xf32> -> vector<2x128xf32>
    %c5_44 = arith.constant 5 : index
    %c0_45 = arith.constant 0 : index
    %c0_46 = arith.constant 0 : index
    %64 = vector.load %arg2[%c5_44, %c0_45, %c0_46] : memref<8x1x128xf32, #tpu.memory_space<vmem>>, vector<1x1x128xf32>
    %65 = vector.shape_cast %64 : vector<1x1x128xf32> to vector<1x128xf32>
    %66 = vector.broadcast %65 : vector<1x128xf32> to vector<2x128xf32>
    %67 = arith.addf %63, %66 : vector<2x128xf32>
    %cst_47 = arith.constant 0.000000e+00 : f32
    %68 = vector.broadcast %cst_47 : f32 to vector<2x128xf32>
    %69 = arith.cmpf ogt, %67, %68 : vector<2x128xf32>
    %cst_48 = arith.constant 0.00999999977 : f32
    %70 = vector.broadcast %cst_48 : f32 to vector<2x128xf32>
    %71 = arith.mulf %70, %67 : vector<2x128xf32>
    %72 = arith.select %69, %67, %71 : vector<2x128xi1>, vector<2x128xf32>
    %c6 = arith.constant 6 : index
    %c0_49 = arith.constant 0 : index
    %c0_50 = arith.constant 0 : index
    %73 = vector.load %arg1[%c6, %c0_49, %c0_50] : memref<8x128x128xf32, #tpu.memory_space<vmem>>, vector<1x128x128xf32>
    %74 = vector.shape_cast %73 : vector<1x128x128xf32> to vector<128x128xf32>
    %cst_51 = arith.constant dense<0.000000e+00> : vector<2x128xf32>
    %75 = tpu.matmul %72, %74, %cst_51 {dimension_numbers = #tpu.dot_dimension_numbers<[1], [0], [0], [1], [0, 0, 1, 1], [], []>} : vector<2x128xf32>, vector<128x128xf32>, vector<2x128xf32> -> vector<2x128xf32>
    %c6_52 = arith.constant 6 : index
    %c0_53 = arith.constant 0 : index
    %c0_54 = arith.constant 0 : index
    %76 = vector.load %arg2[%c6_52, %c0_53, %c0_54] : memref<8x1x128xf32, #tpu.memory_space<vmem>>, vector<1x1x128xf32>
    %77 = vector.shape_cast %76 : vector<1x1x128xf32> to vector<1x128xf32>
    %78 = vector.broadcast %77 : vector<1x128xf32> to vector<2x128xf32>
    %79 = arith.addf %75, %78 : vector<2x128xf32>
    %cst_55 = arith.constant 0.000000e+00 : f32
    %80 = vector.broadcast %cst_55 : f32 to vector<2x128xf32>
    %81 = arith.cmpf ogt, %79, %80 : vector<2x128xf32>
    %cst_56 = arith.constant 0.00999999977 : f32
    %82 = vector.broadcast %cst_56 : f32 to vector<2x128xf32>
    %83 = arith.mulf %82, %79 : vector<2x128xf32>
    %84 = arith.select %81, %79, %83 : vector<2x128xi1>, vector<2x128xf32>
    %c7 = arith.constant 7 : index
    %c0_57 = arith.constant 0 : index
    %c0_58 = arith.constant 0 : index
    %85 = vector.load %arg1[%c7, %c0_57, %c0_58] : memref<8x128x128xf32, #tpu.memory_space<vmem>>, vector<1x128x128xf32>
    %86 = vector.shape_cast %85 : vector<1x128x128xf32> to vector<128x128xf32>
    %cst_59 = arith.constant dense<0.000000e+00> : vector<2x128xf32>
    %87 = tpu.matmul %84, %86, %cst_59 {dimension_numbers = #tpu.dot_dimension_numbers<[1], [0], [0], [1], [0, 0, 1, 1], [], []>} : vector<2x128xf32>, vector<128x128xf32>, vector<2x128xf32> -> vector<2x128xf32>
    %c7_60 = arith.constant 7 : index
    %c0_61 = arith.constant 0 : index
    %c0_62 = arith.constant 0 : index
    %88 = vector.load %arg2[%c7_60, %c0_61, %c0_62] : memref<8x1x128xf32, #tpu.memory_space<vmem>>, vector<1x1x128xf32>
    %89 = vector.shape_cast %88 : vector<1x1x128xf32> to vector<1x128xf32>
    %90 = vector.broadcast %89 : vector<1x128xf32> to vector<2x128xf32>
    %91 = arith.addf %87, %90 : vector<2x128xf32>
    %cst_63 = arith.constant 0.000000e+00 : f32
    %92 = vector.broadcast %cst_63 : f32 to vector<2x128xf32>
    %93 = arith.cmpf ogt, %91, %92 : vector<2x128xf32>
    %cst_64 = arith.constant 0.00999999977 : f32
    %94 = vector.broadcast %cst_64 : f32 to vector<2x128xf32>
    %95 = arith.mulf %94, %91 : vector<2x128xf32>
    %96 = arith.select %93, %91, %95 : vector<2x128xi1>, vector<2x128xf32>
    %c0_65 = arith.constant 0 : index
    %c0_66 = arith.constant 0 : index
    %97 = vector.load %arg3[%c0_65, %c0_66] : memref<2x128xf32, #tpu.memory_space<vmem>>, vector<2x128xf32>
    tpu.vector_store %arg3[%c0_65, %c0_66], %96 {strides = array<i32>} : memref<2x128xf32, #tpu.memory_space<vmem>>, vector<2x128xf32>,
    return
  }
}

</mosaic_0001>

<llo_original>
// kernel: tpu_custom_call.1
$region0: #{tpu_custom_call.1}
  #allocation0 [shape = 'u32[]', space=smem, size = 0x4, offset = 0x4, fixed_abs, tag = 'smem constant byte address 0x4 - core index']
  #allocation1 [shape = 'u32[144,128]{1,0:T(1,128)}', space=vmem, size = 0x12000, scoped, tag = 'internal scratch']
  %s0 = inlined_call_operand.hbm [shape: f32[2,128], index: 0, kind: input, shape index: {}]
  %s1 = inlined_call_operand.hbm [shape: f32[8,128,128], index: 1, kind: input, shape index: {}]
  %s2 = inlined_call_operand.hbm [shape: f32[8,1,128], index: 2, kind: input, shape index: {}]
  %s3 = inlined_call_operand.hbm [shape: f32[2,128], index: 3, kind: output, shape index: {}]
  %s4 = sld [smem:[#allocation0]]
  $region34: #{tpu_custom_call.1} parent=0
    _
  %s6 = ssub.s32 1, %s4
  %s7 = scalar_select 0, %s6, %s4
  $region1: #{tpu_custom_call.1} parent=0
    #allocation2 [shape = 'u8[1024]{0}', space=vmem, size = 0x400, scoped, tag = 'input window, operand 0, single buffered']
    #allocation3 [shape = 's32[1]{0}', space=sflag, size = 0x4, scoped, tag = 'scoped memory for tpu_custom_call.1']
    #allocation4 [shape = 's32[1]{0}', space=sflag, size = 0x4, scoped, tag = 'scoped memory for tpu_custom_call.1']
    #allocation5 [shape = 'u8[524288]{0}', space=vmem, size = 0x80000, scoped, tag = 'input window, operand 1, single buffered']
    #allocation6 [shape = 's32[1]{0}', space=sflag, size = 0x4, scoped, tag = 'scoped memory for tpu_custom_call.1']
    #allocation7 [shape = 'u8[4096]{0}', space=vmem, size = 0x1000, scoped, tag = 'input window, operand 2, single buffered']
    #allocation8 [shape = 'u8[1024]{0}', space=vmem, size = 0x400, scoped, tag = 'output window, operand 0, single buffered']
    %8 = vsyncpa [#allocation3], 0
    %9 = vsyncpa [#allocation6], 0
    %10 = vsyncpa [#allocation4], 0
    // Predicated region
    $region2: #{tpu_custom_call.1} parent=1 // pred_check
      _
    $region3: #{tpu_custom_call.1} parent=1 // pred_check_branch
      %12 = sbr.rel (0) target = $region5
    $region4: #{tpu_custom_call.1} parent=1 // pred_region
      %s14 = ssub.s32 32, 32
      %15 = vsyncadd [#allocation3], %s14
      %s17 = sshll.u32 [#allocation2], 4
      %s18 = int_to_ptr.vmem [resolvable:$true] %s17
      %20 = dma.hbm_to_vmem [thread:$0]  %s0, 32, %s18, [#allocation3]
    $region5: #{tpu_custom_call.1} parent=1 // pred_fallthru
      _
    // Predicated region
    $region6: #{tpu_custom_call.1} parent=1 // pred_check
      _
    $region7: #{tpu_custom_call.1} parent=1 // pred_check_branch
      %22 = sbr.rel (0) target = $region9
    $region8: #{tpu_custom_call.1} parent=1 // pred_region
      %s24 = ssub.s32 16384, 16384
      %25 = vsyncadd [#allocation6], %s24
      %s26 = sshll.u32 [#allocation5], 4
      %s27 = int_to_ptr.vmem [resolvable:$true] %s26
      %32 = dma.hbm_to_vmem [thread:$0]  %s1, 16384, %s27, [#allocation6], 128, 128, 8
    $region9: #{tpu_custom_call.1} parent=1 // pred_fallthru
      _
    // Predicated region
    $region10: #{tpu_custom_call.1} parent=1 // pred_check
      _
    $region11: #{tpu_custom_call.1} parent=1 // pred_check_branch
      %34 = sbr.rel (0) target = $region13
    $region12: #{tpu_custom_call.1} parent=1 // pred_region
      %s36 = ssub.s32 128, 128
      %37 = vsyncadd [#allocation6], %s36
      %s38 = sshll.u32 [#allocation7], 4
      %s39 = int_to_ptr.vmem [resolvable:$true] %s38
      %44 = dma.hbm_to_vmem [thread:$0]  %s2, 128, %s39, [#allocation6], 16, 16, 1
    $region13: #{tpu_custom_call.1} parent=1 // pred_fallthru
      _
    // Predicated region
    $region14: #{tpu_custom_call.1} parent=1 // pred_check
      _
    $region15: #{tpu_custom_call.1} parent=1 // pred_check_branch
      %46 = sbr.rel (0) target = $region17
    $region16: #{tpu_custom_call.1} parent=1 // pred_region
      %47 = dma.done [#allocation3], 32
    $region17: #{tpu_custom_call.1} parent=1 // pred_fallthru
      _
    // Predicated region
    $region18: #{tpu_custom_call.1} parent=1 // pred_check
      _
    $region19: #{tpu_custom_call.1} parent=1 // pred_check_branch
      %49 = sbr.rel (0) target = $region21
    $region20: #{tpu_custom_call.1} parent=1 // pred_region
      %50 = dma.done [#allocation6], 16384
    $region21: #{tpu_custom_call.1} parent=1 // pred_fallthru
      _
    // Predicated region
    $region22: #{tpu_custom_call.1} parent=1 // pred_check
      _
    $region23: #{tpu_custom_call.1} parent=1 // pred_check_branch
      %52 = sbr.rel (0) target = $region25
    $region24: #{tpu_custom_call.1} parent=1 // pred_region
      %53 = dma.done [#allocation6], 128
    $region25: #{tpu_custom_call.1} parent=1 // pred_fallthru
      _
    %v54 = vld [vmem:[#allocation2] sm:$0x3]
    %v55 = vld [vmem:[#allocation5] sm:$0xff]
    %v56 = vld [vmem:[#allocation5 + $0x8] sm:$0xff]
    %v57 = vld [vmem:[#allocation5 + $0x10] sm:$0xff]
    %v58 = vld [vmem:[#allocation5 + $0x18] sm:$0xff]
    %v59 = vld [vmem:[#allocation5 + $0x20] sm:$0xff]
    %v60 = vld [vmem:[#allocation5 + $0x28] sm:$0xff]
    %v61 = vld [vmem:[#allocation5 + $0x30] sm:$0xff]
    %v62 = vld [vmem:[#allocation5 + $0x38] sm:$0xff]
    %v63 = vld [vmem:[#allocation5 + $0x40] sm:$0xff]
    %v64 = vld [vmem:[#allocation5 + $0x48] sm:$0xff]
    %v65 = vld [vmem:[#allocation5 + $0x50] sm:$0xff]
    %v66 = vld [vmem:[#allocation5 + $0x58] sm:$0xff]
    %v67 = vld [vmem:[#allocation5 + $0x60] sm:$0xff]
    %v68 = vld [vmem:[#allocation5 + $0x68] sm:$0xff]
    %v69 = vld [vmem:[#allocation5 + $0x70] sm:$0xff]
    %v70 = vld [vmem:[#allocation5 + $0x78] sm:$0xff]
    %v71 = vld [vmem:[#allocation7] sm:$0x1]
    %v73 = vlaneseq
    %v74 = vshrl.u32 %v73, 7
    %v75 = vsub.s32 0, %v74
    %v76 = vrot.slane %v71, %v75
    %78 = vmatprep.subr.mxu0 0.0
    %79 = vmatpush1.msra.mxu0 %v70
    %80 = vmatprep.subr.mxu0 0.0
    %81 = vmatpush1.msra.mxu0 %v69
    %82 = vmatprep.subr.mxu0 0.0
    %83 = vmatpush1.msra.mxu0 %v68
    %84 = vmatprep.subr.mxu0 0.0
    %85 = vmatpush1.msra.mxu0 %v67
    %86 = vmatprep.subr.mxu0 0.0
    %87 = vmatpush1.msra.mxu0 %v66
    %88 = vmatprep.subr.mxu0 0.0
    %89 = vmatpush1.msra.mxu0 %v65
    %90 = vmatprep.subr.mxu0 0.0
    %91 = vmatpush1.msra.mxu0 %v64
    %92 = vmatprep.subr.mxu0 0.0
    %93 = vmatpush1.msra.mxu0 %v63
    %94 = vmatprep.subr.mxu0 0.0
    %95 = vmatpush1.msra.mxu0 %v62
    %96 = vmatprep.subr.mxu0 0.0
    %97 = vmatpush1.msra.mxu0 %v61
    %98 = vmatprep.subr.mxu0 0.0
    %99 = vmatpush1.msra.mxu0 %v60
    %100 = vmatprep.subr.mxu0 0.0
    %101 = vmatpush1.msra.mxu0 %v59
    %102 = vmatprep.subr.mxu0 0.0
    %103 = vmatpush1.msra.mxu0 %v58
    %104 = vmatprep.subr.mxu0 0.0
    %105 = vmatpush1.msra.mxu0 %v57
    %106 = vmatprep.subr.mxu0 0.0
    %107 = vmatpush1.msra.mxu0 %v56
    %108 = vmatprep.subr.mxu0 0.0
    %109 = vmatpush1.msra.mxu0 %v55
    %110 = vmatprep.subr.mxu0 0.0
    %111 = vmatpush2.msra.mxu0 0.0
    %112 = vmatprep.subr.mxu0 0.0
    %113 = vmatpush2.msra.mxu0 0.0
    %114 = vmatprep.subr.mxu0 0.0
    %115 = vmatpush2.msra.mxu0 0.0
    %116 = vmatprep.subr.mxu0 0.0
    %117 = vmatpush2.msra.mxu0 0.0
    %118 = vmatprep.subr.mxu0 0.0
    %119 = vmatpush2.msra.mxu0 0.0
    %120 = vmatprep.subr.mxu0 0.0
    %121 = vmatpush2.msra.mxu0 0.0
    %122 = vmatprep.subr.mxu0 0.0
    %123 = vmatpush2.msra.mxu0 0.0
    %124 = vmatprep.subr.mxu0 0.0
    %125 = vmatpush2.msra.mxu0 0.0
    %126 = vmatprep.subr.mxu0 0.0
    %127 = vmatpush2.msra.mxu0 0.0
    %128 = vmatprep.subr.mxu0 0.0
    %129 = vmatpush2.msra.mxu0 0.0
    %130 = vmatprep.subr.mxu0 0.0
    %131 = vmatpush2.msra.mxu0 0.0
    %132 = vmatprep.subr.mxu0 0.0
    %133 = vmatpush2.msra.mxu0 0.0
    %134 = vmatprep.subr.mxu0 0.0
    %135 = vmatpush2.msra.mxu0 0.0
    %136 = vmatprep.subr.mxu0 0.0
    %137 = vmatpush2.msra.mxu0 0.0
    %138 = vmatprep.subr.mxu0 0.0
    %139 = vmatpush2.msra.mxu0 0.0
    %140 = vmatprep.subr.mxu0 0.0
    %141 = vmatpush2.msra.mxu0 0.0
    %142 = vmatprep.mubr.f32.mxu0 0.0
    %143 = vmatmul.mubr.f32.gmra.mxu0 %v54
    %v144 = vpop.f32.mrf.mxu0
    %v145 = vadd.f32 %v76, %v144
    %v146 = vpop.f32.mrf.mxu0
    %147 = vdwg.mxu0
    %vm148 = vcmp.gt.f32.partialorder %v145, 0.0
    %v149 = vmul.f32 %v145, 0.01
    %v150 = vsel %vm148, %v145, %v149
    %s151 = scalar_lea.vmem [#allocation5], 128
    %v152 = vld [vmem:[%s151] sm:$0xff]
    %v153 = vld [vmem:[%s151 + $0x8] sm:$0xff]
    %v154 = vld [vmem:[%s151 + $0x10] sm:$0xff]
    %v155 = vld [vmem:[%s151 + $0x18] sm:$0xff]
    %v156 = vld [vmem:[%s151 + $0x20] sm:$0xff]
    %v157 = vld [vmem:[%s151 + $0x28] sm:$0xff]
    %v158 = vld [vmem:[%s151 + $0x30] sm:$0xff]
    %v159 = vld [vmem:[%s151 + $0x38] sm:$0xff]
    %v160 = vld [vmem:[%s151 + $0x40] sm:$0xff]
    %v161 = vld [vmem:[%s151 + $0x48] sm:$0xff]
    %v162 = vld [vmem:[%s151 + $0x50] sm:$0xff]
    %v163 = vld [vmem:[%s151 + $0x58] sm:$0xff]
    %v164 = vld [vmem:[%s151 + $0x60] sm:$0xff]
    %v165 = vld [vmem:[%s151 + $0x68] sm:$0xff]
    %v166 = vld [vmem:[%s151 + $0x70] sm:$0xff]
    %v167 = vld [vmem:[%s151 + $0x78] sm:$0xff]
    %s168 = scalar_lea.vmem [#allocation7], 1
    %v169 = vld [vmem:[%s168] sm:$0x1]
    %v171 = vlaneseq
    %v172 = vshrl.u32 %v171, 7
    %v173 = vsub.s32 0, %v172
    %v174 = vrot.slane %v169, %v173
    %176 = vmatprep.subr.mxu0 0.0
    %177 = vmatpush1.msra.mxu0 %v167
    %178 = vmatprep.subr.mxu0 0.0
    %179 = vmatpush1.msra.mxu0 %v166
    %180 = vmatprep.subr.mxu0 0.0
    %181 = vmatpush1.msra.mxu0 %v165
    %182 = vmatprep.subr.mxu0 0.0
    %183 = vmatpush1.msra.mxu0 %v164
    %184 = vmatprep.subr.mxu0 0.0
    %185 = vmatpush1.msra.mxu0 %v163
    %186 = vmatprep.subr.mxu0 0.0
    %187 = vmatpush1.msra.mxu0 %v162
    %188 = vmatprep.subr.mxu0 0.0
    %189 = vmatpush1.msra.mxu0 %v161
    %190 = vmatprep.subr.mxu0 0.0
    %191 = vmatpush1.msra.mxu0 %v160
    %192 = vmatprep.subr.mxu0 0.0
    %193 = vmatpush1.msra.mxu0 %v159
    %194 = vmatprep.subr.mxu0 0.0
    %195 = vmatpush1.msra.mxu0 %v158
    %196 = vmatprep.subr.mxu0 0.0
    %197 = vmatpush1.msra.mxu0 %v157
    %198 = vmatprep.subr.mxu0 0.0
    %199 = vmatpush1.msra.mxu0 %v156
    %200 = vmatprep.subr.mxu0 0.0
    %201 = vmatpush1.msra.mxu0 %v155
    %202 = vmatprep.subr.mxu0 0.0
    %203 = vmatpush1.msra.mxu0 %v154
    %204 = vmatprep.subr.mxu0 0.0
    %205 = vmatpush1.msra.mxu0 %v153
    %206 = vmatprep.subr.mxu0 0.0
    %207 = vmatpush1.msra.mxu0 %v152
    %208 = vmatprep.subr.mxu0 0.0
    %209 = vmatpush2.msra.mxu0 0.0
    %210 = vmatprep.subr.mxu0 0.0
    %211 = vmatpush2.msra.mxu0 0.0
    %212 = vmatprep.subr.mxu0 0.0
    %213 = vmatpush2.msra.mxu0 0.0
    %214 = vmatprep.subr.mxu0 0.0
    %215 = vmatpush2.msra.mxu0 0.0
    %216 = vmatprep.subr.mxu0 0.0
    %217 = vmatpush2.msra.mxu0 0.0
    %218 = vmatprep.subr.mxu0 0.0
    %219 = vmatpush2.msra.mxu0 0.0
    %220 = vmatprep.subr.mxu0 0.0
    %221 = vmatpush2.msra.mxu0 0.0
    %222 = vmatprep.subr.mxu0 0.0
    %223 = vmatpush2.msra.mxu0 0.0
    %224 = vmatprep.subr.mxu0 0.0
    %225 = vmatpush2.msra.mxu0 0.0
    %226 = vmatprep.subr.mxu0 0.0
    %227 = vmatpush2.msra.mxu0 0.0
    %228 = vmatprep.subr.mxu0 0.0
    %229 = vmatpush2.msra.mxu0 0.0
    %230 = vmatprep.subr.mxu0 0.0
    %231 = vmatpush2.msra.mxu0 0.0
    %232 = vmatprep.subr.mxu0 0.0
    %233 = vmatpush2.msra.mxu0 0.0
    %234 = vmatprep.subr.mxu0 0.0
    %235 = vmatpush2.msra.mxu0 0.0
    %236 = vmatprep.subr.mxu0 0.0
    %237 = vmatpush2.msra.mxu0 0.0
    %238 = vmatprep.subr.mxu0 0.0
    %239 = vmatpush2.msra.mxu0 0.0
    %240 = vmatprep.mubr.f32.mxu0 0.0
    %241 = vmatmul.mubr.f32.gmra.mxu0 %v150
    %v242 = vpop.f32.mrf.mxu0
    %v243 = vadd.f32 %v174, %v242
    %v244 = vpop.f32.mrf.mxu0
    %245 = vdwg.mxu0
    %vm246 = vcmp.gt.f32.partialorder %v243, 0.0
    %v247 = vmul.f32 %v243, 0.01
    %v248 = vsel %vm246, %v243, %v247
    %s249 = scalar_lea.vmem [#allocation5], 256
    %v250 = vld [vmem:[%s249] sm:$0xff]
    %v251 = vld [vmem:[%s249 + $0x8] sm:$0xff]
    %v252 = vld [vmem:[%s249 + $0x10] sm:$0xff]
    %v253 = vld [vmem:[%s249 + $0x18] sm:$0xff]
    %v254 = vld [vmem:[%s249 + $0x20] sm:$0xff]
    %v255 = vld [vmem:[%s249 + $0x28] sm:$0xff]
    %v256 = vld [vmem:[%s249 + $0x30] sm:$0xff]
    %v257 = vld [vmem:[%s249 + $0x38] sm:$0xff]
    %v258 = vld [vmem:[%s249 + $0x40] sm:$0xff]
    %v259 = vld [vmem:[%s249 + $0x48] sm:$0xff]
    %v260 = vld [vmem:[%s249 + $0x50] sm:$0xff]
    %v261 = vld [vmem:[%s249 + $0x58] sm:$0xff]
    %v262 = vld [vmem:[%s249 + $0x60] sm:$0xff]
    %v263 = vld [vmem:[%s249 + $0x68] sm:$0xff]
    %v264 = vld [vmem:[%s249 + $0x70] sm:$0xff]
    %v265 = vld [vmem:[%s249 + $0x78] sm:$0xff]
    %s266 = scalar_lea.vmem [#allocation7], 2
    %v267 = vld [vmem:[%s266] sm:$0x1]
    %v269 = vlaneseq
    %v270 = vshrl.u32 %v269, 7
    %v271 = vsub.s32 0, %v270
    %v272 = vrot.slane %v267, %v271
    %274 = vmatprep.subr.mxu0 0.0
    %275 = vmatpush1.msra.mxu0 %v265
    %276 = vmatprep.subr.mxu0 0.0
    %277 = vmatpush1.msra.mxu0 %v264
    %278 = vmatprep.subr.mxu0 0.0
    %279 = vmatpush1.msra.mxu0 %v263
    %280 = vmatprep.subr.mxu0 0.0
    %281 = vmatpush1.msra.mxu0 %v262
    %282 = vmatprep.subr.mxu0 0.0
    %283 = vmatpush1.msra.mxu0 %v261
    %284 = vmatprep.subr.mxu0 0.0
    %285 = vmatpush1.msra.mxu0 %v260
    %286 = vmatprep.subr.mxu0 0.0
    %287 = vmatpush1.msra.mxu0 %v259
    %288 = vmatprep.subr.mxu0 0.0
    %289 = vmatpush1.msra.mxu0 %v258
    %290 = vmatprep.subr.mxu0 0.0
    %291 = vmatpush1.msra.mxu0 %v257
    %292 = vmatprep.subr.mxu0 0.0
    %293 = vmatpush1.msra.mxu0 %v256
    %294 = vmatprep.subr.mxu0 0.0
    %295 = vmatpush1.msra.mxu0 %v255
    %296 = vmatprep.subr.mxu0 0.0
    %297 = vmatpush1.msra.mxu0 %v254
    %298 = vmatprep.subr.mxu0 0.0
    %299 = vmatpush1.msra.mxu0 %v253
    %300 = vmatprep.subr.mxu0 0.0
    %301 = vmatpush1.msra.mxu0 %v252
    %302 = vmatprep.subr.mxu0 0.0
    %303 = vmatpush1.msra.mxu0 %v251
    %304 = vmatprep.subr.mxu0 0.0
    %305 = vmatpush1.msra.mxu0 %v250
    %306 = vmatprep.subr.mxu0 0.0
    %307 = vmatpush2.msra.mxu0 0.0
    %308 = vmatprep.subr.mxu0 0.0
    %309 = vmatpush2.msra.mxu0 0.0
    %310 = vmatprep.subr.mxu0 0.0
    %311 = vmatpush2.msra.mxu0 0.0
    %312 = vmatprep.subr.mxu0 0.0
    %313 = vmatpush2.msra.mxu0 0.0
    %314 = vmatprep.subr.mxu0 0.0
    %315 = vmatpush2.msra.mxu0 0.0
    %316 = vmatprep.subr.mxu0 0.0
    %317 = vmatpush2.msra.mxu0 0.0
    %318 = vmatprep.subr.mxu0 0.0
    %319 = vmatpush2.msra.mxu0 0.0
    %320 = vmatprep.subr.mxu0 0.0
    %321 = vmatpush2.msra.mxu0 0.0
    %322 = vmatprep.subr.mxu0 0.0
    %323 = vmatpush2.msra.mxu0 0.0
    %324 = vmatprep.subr.mxu0 0.0
    %325 = vmatpush2.msra.mxu0 0.0
    %326 = vmatprep.subr.mxu0 0.0
    %327 = vmatpush2.msra.mxu0 0.0
    %328 = vmatprep.subr.mxu0 0.0
    %329 = vmatpush2.msra.mxu0 0.0
    %330 = vmatprep.subr.mxu0 0.0
    %331 = vmatpush2.msra.mxu0 0.0
    %332 = vmatprep.subr.mxu0 0.0
    %333 = vmatpush2.msra.mxu0 0.0
    %334 = vmatprep.subr.mxu0 0.0
    %335 = vmatpush2.msra.mxu0 0.0
    %336 = vmatprep.subr.mxu0 0.0
    %337 = vmatpush2.msra.mxu0 0.0
    %338 = vmatprep.mubr.f32.mxu0 0.0
    %339 = vmatmul.mubr.f32.gmra.mxu0 %v248
    %v340 = vpop.f32.mrf.mxu0
    %v341 = vadd.f32 %v272, %v340
    %v342 = vpop.f32.mrf.mxu0
    %343 = vdwg.mxu0
    %vm344 = vcmp.gt.f32.partialorder %v341, 0.0
    %v345 = vmul.f32 %v341, 0.01
    %v346 = vsel %vm344, %v341, %v345
    %s347 = scalar_lea.vmem [#allocation5], 384
    %v348 = vld [vmem:[%s347] sm:$0xff]
    %v349 = vld [vmem:[%s347 + $0x8] sm:$0xff]
    %v350 = vld [vmem:[%s347 + $0x10] sm:$0xff]
    %v351 = vld [vmem:[%s347 + $0x18] sm:$0xff]
    %v352 = vld [vmem:[%s347 + $0x20] sm:$0xff]
    %v353 = vld [vmem:[%s347 + $0x28] sm:$0xff]
    %v354 = vld [vmem:[%s347 + $0x30] sm:$0xff]
    %v355 = vld [vmem:[%s347 + $0x38] sm:$0xff]
    %v356 = vld [vmem:[%s347 + $0x40] sm:$0xff]
    %v357 = vld [vmem:[%s347 + $0x48] sm:$0xff]
    %v358 = vld [vmem:[%s347 + $0x50] sm:$0xff]
    %v359 = vld [vmem:[%s347 + $0x58] sm:$0xff]
    %v360 = vld [vmem:[%s347 + $0x60] sm:$0xff]
    %v361 = vld [vmem:[%s347 + $0x68] sm:$0xff]
    %v362 = vld [vmem:[%s347 + $0x70] sm:$0xff]
    %v363 = vld [vmem:[%s347 + $0x78] sm:$0xff]
    %s364 = scalar_lea.vmem [#allocation7], 3
    %v365 = vld [vmem:[%s364] sm:$0x1]
    %v367 = vlaneseq
    %v368 = vshrl.u32 %v367, 7
    %v369 = vsub.s32 0, %v368
    %v370 = vrot.slane %v365, %v369
    %372 = vmatprep.subr.mxu0 0.0
    %373 = vmatpush1.msra.mxu0 %v363
    %374 = vmatprep.subr.mxu0 0.0
    %375 = vmatpush1.msra.mxu0 %v362
    %376 = vmatprep.subr.mxu0 0.0
    %377 = vmatpush1.msra.mxu0 %v361
    %378 = vmatprep.subr.mxu0 0.0
    %379 = vmatpush1.msra.mxu0 %v360
    %380 = vmatprep.subr.mxu0 0.0
    %381 = vmatpush1.msra.mxu0 %v359
    %382 = vmatprep.subr.mxu0 0.0
    %383 = vmatpush1.msra.mxu0 %v358
    %384 = vmatprep.subr.mxu0 0.0
    %385 = vmatpush1.msra.mxu0 %v357
    %386 = vmatprep.subr.mxu0 0.0
    %387 = vmatpush1.msra.mxu0 %v356
    %388 = vmatprep.subr.mxu0 0.0
    %389 = vmatpush1.msra.mxu0 %v355
    %390 = vmatprep.subr.mxu0 0.0
    %391 = vmatpush1.msra.mxu0 %v354
    %392 = vmatprep.subr.mxu0 0.0
    %393 = vmatpush1.msra.mxu0 %v353
    %394 = vmatprep.subr.mxu0 0.0
    %395 = vmatpush1.msra.mxu0 %v352
    %396 = vmatprep.subr.mxu0 0.0
    %397 = vmatpush1.msra.mxu0 %v351
    %398 = vmatprep.subr.mxu0 0.0
    %399 = vmatpush1.msra.mxu0 %v350
    %400 = vmatprep.subr.mxu0 0.0
    %401 = vmatpush1.msra.mxu0 %v349
    %402 = vmatprep.subr.mxu0 0.0
    %403 = vmatpush1.msra.mxu0 %v348
    %404 = vmatprep.subr.mxu0 0.0
    %405 = vmatpush2.msra.mxu0 0.0
    %406 = vmatprep.subr.mxu0 0.0
    %407 = vmatpush2.msra.mxu0 0.0
    %408 = vmatprep.subr.mxu0 0.0
    %409 = vmatpush2.msra.mxu0 0.0
    %410 = vmatprep.subr.mxu0 0.0
    %411 = vmatpush2.msra.mxu0 0.0
    %412 = vmatprep.subr.mxu0 0.0
    %413 = vmatpush2.msra.mxu0 0.0
    %414 = vmatprep.subr.mxu0 0.0
    %415 = vmatpush2.msra.mxu0 0.0
    %416 = vmatprep.subr.mxu0 0.0
    %417 = vmatpush2.msra.mxu0 0.0
    %418 = vmatprep.subr.mxu0 0.0
    %419 = vmatpush2.msra.mxu0 0.0
    %420 = vmatprep.subr.mxu0 0.0
    %421 = vmatpush2.msra.mxu0 0.0
    %422 = vmatprep.subr.mxu0 0.0
    %423 = vmatpush2.msra.mxu0 0.0
    %424 = vmatprep.subr.mxu0 0.0
    %425 = vmatpush2.msra.mxu0 0.0
    %426 = vmatprep.subr.mxu0 0.0
    %427 = vmatpush2.msra.mxu0 0.0
    %428 = vmatprep.subr.mxu0 0.0
    %429 = vmatpush2.msra.mxu0 0.0
    %430 = vmatprep.subr.mxu0 0.0
    %431 = vmatpush2.msra.mxu0 0.0
    %432 = vmatprep.subr.mxu0 0.0
    %433 = vmatpush2.msra.mxu0 0.0
    %434 = vmatprep.subr.mxu0 0.0
    %435 = vmatpush2.msra.mxu0 0.0
    %436 = vmatprep.mubr.f32.mxu0 0.0
    %437 = vmatmul.mubr.f32.gmra.mxu0 %v346
    %v438 = vpop.f32.mrf.mxu0
    %v439 = vadd.f32 %v370, %v438
    %v440 = vpop.f32.mrf.mxu0
    %441 = vdwg.mxu0
    %vm442 = vcmp.gt.f32.partialorder %v439, 0.0
    %v443 = vmul.f32 %v439, 0.01
    %v444 = vsel %vm442, %v439, %v443
    %s445 = scalar_lea.vmem [#allocation5], 512
    %v446 = vld [vmem:[%s445] sm:$0xff]
    %v447 = vld [vmem:[%s445 + $0x8] sm:$0xff]
    %v448 = vld [vmem:[%s445 + $0x10] sm:$0xff]
    %v449 = vld [vmem:[%s445 + $0x18] sm:$0xff]
    %v450 = vld [vmem:[%s445 + $0x20] sm:$0xff]
    %v451 = vld [vmem:[%s445 + $0x28] sm:$0xff]
    %v452 = vld [vmem:[%s445 + $0x30] sm:$0xff]
    %v453 = vld [vmem:[%s445 + $0x38] sm:$0xff]
    %v454 = vld [vmem:[%s445 + $0x40] sm:$0xff]
    %v455 = vld [vmem:[%s445 + $0x48] sm:$0xff]
    %v456 = vld [vmem:[%s445 + $0x50] sm:$0xff]
    %v457 = vld [vmem:[%s445 + $0x58] sm:$0xff]
    %v458 = vld [vmem:[%s445 + $0x60] sm:$0xff]
    %v459 = vld [vmem:[%s445 + $0x68] sm:$0xff]
    %v460 = vld [vmem:[%s445 + $0x70] sm:$0xff]
    %v461 = vld [vmem:[%s445 + $0x78] sm:$0xff]
    %s462 = scalar_lea.vmem [#allocation7], 4
    %v463 = vld [vmem:[%s462] sm:$0x1]
    %v465 = vlaneseq
    %v466 = vshrl.u32 %v465, 7
    %v467 = vsub.s32 0, %v466
    %v468 = vrot.slane %v463, %v467
    %470 = vmatprep.subr.mxu0 0.0
    %471 = vmatpush1.msra.mxu0 %v461
    %472 = vmatprep.subr.mxu0 0.0
    %473 = vmatpush1.msra.mxu0 %v460
    %474 = vmatprep.subr.mxu0 0.0
    %475 = vmatpush1.msra.mxu0 %v459
    %476 = vmatprep.subr.mxu0 0.0
    %477 = vmatpush1.msra.mxu0 %v458
    %478 = vmatprep.subr.mxu0 0.0
    %479 = vmatpush1.msra.mxu0 %v457
    %480 = vmatprep.subr.mxu0 0.0
    %481 = vmatpush1.msra.mxu0 %v456
    %482 = vmatprep.subr.mxu0 0.0
    %483 = vmatpush1.msra.mxu0 %v455
    %484 = vmatprep.subr.mxu0 0.0
    %485 = vmatpush1.msra.mxu0 %v454
    %486 = vmatprep.subr.mxu0 0.0
    %487 = vmatpush1.msra.mxu0 %v453
    %488 = vmatprep.subr.mxu0 0.0
    %489 = vmatpush1.msra.mxu0 %v452
    %490 = vmatprep.subr.mxu0 0.0
    %491 = vmatpush1.msra.mxu0 %v451
    %492 = vmatprep.subr.mxu0 0.0
    %493 = vmatpush1.msra.mxu0 %v450
    %494 = vmatprep.subr.mxu0 0.0
    %495 = vmatpush1.msra.mxu0 %v449
    %496 = vmatprep.subr.mxu0 0.0
    %497 = vmatpush1.msra.mxu0 %v448
    %498 = vmatprep.subr.mxu0 0.0
    %499 = vmatpush1.msra.mxu0 %v447
    %500 = vmatprep.subr.mxu0 0.0
    %501 = vmatpush1.msra.mxu0 %v446
    %502 = vmatprep.subr.mxu0 0.0
    %503 = vmatpush2.msra.mxu0 0.0
    %504 = vmatprep.subr.mxu0 0.0
    %505 = vmatpush2.msra.mxu0 0.0
    %506 = vmatprep.subr.mxu0 0.0
    %507 = vmatpush2.msra.mxu0 0.0
    %508 = vmatprep.subr.mxu0 0.0
    %509 = vmatpush2.msra.mxu0 0.0
    %510 = vmatprep.subr.mxu0 0.0
    %511 = vmatpush2.msra.mxu0 0.0
    %512 = vmatprep.subr.mxu0 0.0
    %513 = vmatpush2.msra.mxu0 0.0
    %514 = vmatprep.subr.mxu0 0.0
    %515 = vmatpush2.msra.mxu0 0.0
    %516 = vmatprep.subr.mxu0 0.0
    %517 = vmatpush2.msra.mxu0 0.0
    %518 = vmatprep.subr.mxu0 0.0
    %519 = vmatpush2.msra.mxu0 0.0
    %520 = vmatprep.subr.mxu0 0.0
    %521 = vmatpush2.msra.mxu0 0.0
    %522 = vmatprep.subr.mxu0 0.0
    %523 = vmatpush2.msra.mxu0 0.0
    %524 = vmatprep.subr.mxu0 0.0
    %525 = vmatpush2.msra.mxu0 0.0
    %526 = vmatprep.subr.mxu0 0.0
    %527 = vmatpush2.msra.mxu0 0.0
    %528 = vmatprep.subr.mxu0 0.0
    %529 = vmatpush2.msra.mxu0 0.0
    %530 = vmatprep.subr.mxu0 0.0
    %531 = vmatpush2.msra.mxu0 0.0
    %532 = vmatprep.subr.mxu0 0.0
    %533 = vmatpush2.msra.mxu0 0.0
    %534 = vmatprep.mubr.f32.mxu0 0.0
    %535 = vmatmul.mubr.f32.gmra.mxu0 %v444
    %v536 = vpop.f32.mrf.mxu0
    %v537 = vadd.f32 %v468, %v536
    %v538 = vpop.f32.mrf.mxu0
    %539 = vdwg.mxu0
    %vm540 = vcmp.gt.f32.partialorder %v537, 0.0
    %v541 = vmul.f32 %v537, 0.01
    %v542 = vsel %vm540, %v537, %v541
    %s543 = scalar_lea.vmem [#allocation5], 640
    %v544 = vld [vmem:[%s543] sm:$0xff]
    %v545 = vld [vmem:[%s543 + $0x8] sm:$0xff]
    %v546 = vld [vmem:[%s543 + $0x10] sm:$0xff]
    %v547 = vld [vmem:[%s543 + $0x18] sm:$0xff]
    %v548 = vld [vmem:[%s543 + $0x20] sm:$0xff]
    %v549 = vld [vmem:[%s543 + $0x28] sm:$0xff]
    %v550 = vld [vmem:[%s543 + $0x30] sm:$0xff]
    %v551 = vld [vmem:[%s543 + $0x38] sm:$0xff]
    %v552 = vld [vmem:[%s543 + $0x40] sm:$0xff]
    %v553 = vld [vmem:[%s543 + $0x48] sm:$0xff]
    %v554 = vld [vmem:[%s543 + $0x50] sm:$0xff]
    %v555 = vld [vmem:[%s543 + $0x58] sm:$0xff]
    %v556 = vld [vmem:[%s543 + $0x60] sm:$0xff]
    %v557 = vld [vmem:[%s543 + $0x68] sm:$0xff]
    %v558 = vld [vmem:[%s543 + $0x70] sm:$0xff]
    %v559 = vld [vmem:[%s543 + $0x78] sm:$0xff]
    %s560 = scalar_lea.vmem [#allocation7], 5
    %v561 = vld [vmem:[%s560] sm:$0x1]
    %v563 = vlaneseq
    %v564 = vshrl.u32 %v563, 7
    %v565 = vsub.s32 0, %v564
    %v566 = vrot.slane %v561, %v565
    %568 = vmatprep.subr.mxu0 0.0
    %569 = vmatpush1.msra.mxu0 %v559
    %570 = vmatprep.subr.mxu0 0.0
    %571 = vmatpush1.msra.mxu0 %v558
    %572 = vmatprep.subr.mxu0 0.0
    %573 = vmatpush1.msra.mxu0 %v557
    %574 = vmatprep.subr.mxu0 0.0
    %575 = vmatpush1.msra.mxu0 %v556
    %576 = vmatprep.subr.mxu0 0.0
    %577 = vmatpush1.msra.mxu0 %v555
    %578 = vmatprep.subr.mxu0 0.0
    %579 = vmatpush1.msra.mxu0 %v554
    %580 = vmatprep.subr.mxu0 0.0
    %581 = vmatpush1.msra.mxu0 %v553
    %582 = vmatprep.subr.mxu0 0.0
    %583 = vmatpush1.msra.mxu0 %v552
    %584 = vmatprep.subr.mxu0 0.0
    %585 = vmatpush1.msra.mxu0 %v551
    %586 = vmatprep.subr.mxu0 0.0
    %587 = vmatpush1.msra.mxu0 %v550
    %588 = vmatprep.subr.mxu0 0.0
    %589 = vmatpush1.msra.mxu0 %v549
    %590 = vmatprep.subr.mxu0 0.0
    %591 = vmatpush1.msra.mxu0 %v548
    %592 = vmatprep.subr.mxu0 0.0
    %593 = vmatpush1.msra.mxu0 %v547
    %594 = vmatprep.subr.mxu0 0.0
    %595 = vmatpush1.msra.mxu0 %v546
    %596 = vmatprep.subr.mxu0 0.0
    %597 = vmatpush1.msra.mxu0 %v545
    %598 = vmatprep.subr.mxu0 0.0
    %599 = vmatpush1.msra.mxu0 %v544
    %600 = vmatprep.subr.mxu0 0.0
    %601 = vmatpush2.msra.mxu0 0.0
    %602 = vmatprep.subr.mxu0 0.0
    %603 = vmatpush2.msra.mxu0 0.0
    %604 = vmatprep.subr.mxu0 0.0
    %605 = vmatpush2.msra.mxu0 0.0
    %606 = vmatprep.subr.mxu0 0.0
    %607 = vmatpush2.msra.mxu0 0.0
    %608 = vmatprep.subr.mxu0 0.0
    %609 = vmatpush2.msra.mxu0 0.0
    %610 = vmatprep.subr.mxu0 0.0
    %611 = vmatpush2.msra.mxu0 0.0
    %612 = vmatprep.subr.mxu0 0.0
    %613 = vmatpush2.msra.mxu0 0.0
    %614 = vmatprep.subr.mxu0 0.0
    %615 = vmatpush2.msra.mxu0 0.0
    %616 = vmatprep.subr.mxu0 0.0
    %617 = vmatpush2.msra.mxu0 0.0
    %618 = vmatprep.subr.mxu0 0.0
    %619 = vmatpush2.msra.mxu0 0.0
    %620 = vmatprep.subr.mxu0 0.0
    %621 = vmatpush2.msra.mxu0 0.0
    %622 = vmatprep.subr.mxu0 0.0
    %623 = vmatpush2.msra.mxu0 0.0
    %624 = vmatprep.subr.mxu0 0.0
    %625 = vmatpush2.msra.mxu0 0.0
    %626 = vmatprep.subr.mxu0 0.0
    %627 = vmatpush2.msra.mxu0 0.0
    %628 = vmatprep.subr.mxu0 0.0
    %629 = vmatpush2.msra.mxu0 0.0
    %630 = vmatprep.subr.mxu0 0.0
    %631 = vmatpush2.msra.mxu0 0.0
    %632 = vmatprep.mubr.f32.mxu0 0.0
    %633 = vmatmul.mubr.f32.gmra.mxu0 %v542
    %v634 = vpop.f32.mrf.mxu0
    %v635 = vadd.f32 %v566, %v634
    %v636 = vpop.f32.mrf.mxu0
    %637 = vdwg.mxu0
    %vm638 = vcmp.gt.f32.partialorder %v635, 0.0
    %v639 = vmul.f32 %v635, 0.01
    %v640 = vsel %vm638, %v635, %v639
    %s641 = scalar_lea.vmem [#allocation5], 768
    %v642 = vld [vmem:[%s641] sm:$0xff]
    %v643 = vld [vmem:[%s641 + $0x8] sm:$0xff]
    %v644 = vld [vmem:[%s641 + $0x10] sm:$0xff]
    %v645 = vld [vmem:[%s641 + $0x18] sm:$0xff]
    %v646 = vld [vmem:[%s641 + $0x20] sm:$0xff]
    %v647 = vld [vmem:[%s641 + $0x28] sm:$0xff]
    %v648 = vld [vmem:[%s641 + $0x30] sm:$0xff]
    %v649 = vld [vmem:[%s641 + $0x38] sm:$0xff]
    %v650 = vld [vmem:[%s641 + $0x40] sm:$0xff]
    %v651 = vld [vmem:[%s641 + $0x48] sm:$0xff]
    %v652 = vld [vmem:[%s641 + $0x50] sm:$0xff]
    %v653 = vld [vmem:[%s641 + $0x58] sm:$0xff]
    %v654 = vld [vmem:[%s641 + $0x60] sm:$0xff]
    %v655 = vld [vmem:[%s641 + $0x68] sm:$0xff]
    %v656 = vld [vmem:[%s641 + $0x70] sm:$0xff]
    %v657 = vld [vmem:[%s641 + $0x78] sm:$0xff]
    %s658 = scalar_lea.vmem [#allocation7], 6
    %v659 = vld [vmem:[%s658] sm:$0x1]
    %v661 = vlaneseq
    %v662 = vshrl.u32 %v661, 7
    %v663 = vsub.s32 0, %v662
    %v664 = vrot.slane %v659, %v663
    %666 = vmatprep.subr.mxu0 0.0
    %667 = vmatpush1.msra.mxu0 %v657
    %668 = vmatprep.subr.mxu0 0.0
    %669 = vmatpush1.msra.mxu0 %v656
    %670 = vmatprep.subr.mxu0 0.0
    %671 = vmatpush1.msra.mxu0 %v655
    %672 = vmatprep.subr.mxu0 0.0
    %673 = vmatpush1.msra.mxu0 %v654
    %674 = vmatprep.subr.mxu0 0.0
    %675 = vmatpush1.msra.mxu0 %v653
    %676 = vmatprep.subr.mxu0 0.0
    %677 = vmatpush1.msra.mxu0 %v652
    %678 = vmatprep.subr.mxu0 0.0
    %679 = vmatpush1.msra.mxu0 %v651
    %680 = vmatprep.subr.mxu0 0.0
    %681 = vmatpush1.msra.mxu0 %v650
    %682 = vmatprep.subr.mxu0 0.0
    %683 = vmatpush1.msra.mxu0 %v649
    %684 = vmatprep.subr.mxu0 0.0
    %685 = vmatpush1.msra.mxu0 %v648
    %686 = vmatprep.subr.mxu0 0.0
    %687 = vmatpush1.msra.mxu0 %v647
    %688 = vmatprep.subr.mxu0 0.0
    %689 = vmatpush1.msra.mxu0 %v646
    %690 = vmatprep.subr.mxu0 0.0
    %691 = vmatpush1.msra.mxu0 %v645
    %692 = vmatprep.subr.mxu0 0.0
    %693 = vmatpush1.msra.mxu0 %v644
    %694 = vmatprep.subr.mxu0 0.0
    %695 = vmatpush1.msra.mxu0 %v643
    %696 = vmatprep.subr.mxu0 0.0
    %697 = vmatpush1.msra.mxu0 %v642
    %698 = vmatprep.subr.mxu0 0.0
    %699 = vmatpush2.msra.mxu0 0.0
    %700 = vmatprep.subr.mxu0 0.0
    %701 = vmatpush2.msra.mxu0 0.0
    %702 = vmatprep.subr.mxu0 0.0
    %703 = vmatpush2.msra.mxu0 0.0
    %704 = vmatprep.subr.mxu0 0.0
    %705 = vmatpush2.msra.mxu0 0.0
    %706 = vmatprep.subr.mxu0 0.0
    %707 = vmatpush2.msra.mxu0 0.0
    %708 = vmatprep.subr.mxu0 0.0
    %709 = vmatpush2.msra.mxu0 0.0
    %710 = vmatprep.subr.mxu0 0.0
    %711 = vmatpush2.msra.mxu0 0.0
    %712 = vmatprep.subr.mxu0 0.0
    %713 = vmatpush2.msra.mxu0 0.0
    %714 = vmatprep.subr.mxu0 0.0
    %715 = vmatpush2.msra.mxu0 0.0
    %716 = vmatprep.subr.mxu0 0.0
    %717 = vmatpush2.msra.mxu0 0.0
    %718 = vmatprep.subr.mxu0 0.0
    %719 = vmatpush2.msra.mxu0 0.0
    %720 = vmatprep.subr.mxu0 0.0
    %721 = vmatpush2.msra.mxu0 0.0
    %722 = vmatprep.subr.mxu0 0.0
    %723 = vmatpush2.msra.mxu0 0.0
    %724 = vmatprep.subr.mxu0 0.0
    %725 = vmatpush2.msra.mxu0 0.0
    %726 = vmatprep.subr.mxu0 0.0
    %727 = vmatpush2.msra.mxu0 0.0
    %728 = vmatprep.subr.mxu0 0.0
    %729 = vmatpush2.msra.mxu0 0.0
    %730 = vmatprep.mubr.f32.mxu0 0.0
    %731 = vmatmul.mubr.f32.gmra.mxu0 %v640
    %v732 = vpop.f32.mrf.mxu0
    %v733 = vadd.f32 %v664, %v732
    %v734 = vpop.f32.mrf.mxu0
    %735 = vdwg.mxu0
    %vm736 = vcmp.gt.f32.partialorder %v733, 0.0
    %v737 = vmul.f32 %v733, 0.01
    %v738 = vsel %vm736, %v733, %v737
    %s739 = scalar_lea.vmem [#allocation5], 896
    %v740 = vld [vmem:[%s739] sm:$0xff]
    %v741 = vld [vmem:[%s739 + $0x8] sm:$0xff]
    %v742 = vld [vmem:[%s739 + $0x10] sm:$0xff]
    %v743 = vld [vmem:[%s739 + $0x18] sm:$0xff]
    %v744 = vld [vmem:[%s739 + $0x20] sm:$0xff]
    %v745 = vld [vmem:[%s739 + $0x28] sm:$0xff]
    %v746 = vld [vmem:[%s739 + $0x30] sm:$0xff]
    %v747 = vld [vmem:[%s739 + $0x38] sm:$0xff]
    %v748 = vld [vmem:[%s739 + $0x40] sm:$0xff]
    %v749 = vld [vmem:[%s739 + $0x48] sm:$0xff]
    %v750 = vld [vmem:[%s739 + $0x50] sm:$0xff]
    %v751 = vld [vmem:[%s739 + $0x58] sm:$0xff]
    %v752 = vld [vmem:[%s739 + $0x60] sm:$0xff]
    %v753 = vld [vmem:[%s739 + $0x68] sm:$0xff]
    %v754 = vld [vmem:[%s739 + $0x70] sm:$0xff]
    %v755 = vld [vmem:[%s739 + $0x78] sm:$0xff]
    %s756 = scalar_lea.vmem [#allocation7], 7
    %v757 = vld [vmem:[%s756] sm:$0x1]
    %v759 = vlaneseq
    %v760 = vshrl.u32 %v759, 7
    %v761 = vsub.s32 0, %v760
    %v762 = vrot.slane %v757, %v761
    %764 = vmatprep.subr.mxu0 0.0
    %765 = vmatpush1.msra.mxu0 %v755
    %766 = vmatprep.subr.mxu0 0.0
    %767 = vmatpush1.msra.mxu0 %v754
    %768 = vmatprep.subr.mxu0 0.0
    %769 = vmatpush1.msra.mxu0 %v753
    %770 = vmatprep.subr.mxu0 0.0
    %771 = vmatpush1.msra.mxu0 %v752
    %772 = vmatprep.subr.mxu0 0.0
    %773 = vmatpush1.msra.mxu0 %v751
    %774 = vmatprep.subr.mxu0 0.0
    %775 = vmatpush1.msra.mxu0 %v750
    %776 = vmatprep.subr.mxu0 0.0
    %777 = vmatpush1.msra.mxu0 %v749
    %778 = vmatprep.subr.mxu0 0.0
    %779 = vmatpush1.msra.mxu0 %v748
    %780 = vmatprep.subr.mxu0 0.0
    %781 = vmatpush1.msra.mxu0 %v747
    %782 = vmatprep.subr.mxu0 0.0
    %783 = vmatpush1.msra.mxu0 %v746
    %784 = vmatprep.subr.mxu0 0.0
    %785 = vmatpush1.msra.mxu0 %v745
    %786 = vmatprep.subr.mxu0 0.0
    %787 = vmatpush1.msra.mxu0 %v744
    %788 = vmatprep.subr.mxu0 0.0
    %789 = vmatpush1.msra.mxu0 %v743
    %790 = vmatprep.subr.mxu0 0.0
    %791 = vmatpush1.msra.mxu0 %v742
    %792 = vmatprep.subr.mxu0 0.0
    %793 = vmatpush1.msra.mxu0 %v741
    %794 = vmatprep.subr.mxu0 0.0
    %795 = vmatpush1.msra.mxu0 %v740
    %796 = vmatprep.subr.mxu0 0.0
    %797 = vmatpush2.msra.mxu0 0.0
    %798 = vmatprep.subr.mxu0 0.0
    %799 = vmatpush2.msra.mxu0 0.0
    %800 = vmatprep.subr.mxu0 0.0
    %801 = vmatpush2.msra.mxu0 0.0
    %802 = vmatprep.subr.mxu0 0.0
    %803 = vmatpush2.msra.mxu0 0.0
    %804 = vmatprep.subr.mxu0 0.0
    %805 = vmatpush2.msra.mxu0 0.0
    %806 = vmatprep.subr.mxu0 0.0
    %807 = vmatpush2.msra.mxu0 0.0
    %808 = vmatprep.subr.mxu0 0.0
    %809 = vmatpush2.msra.mxu0 0.0
    %810 = vmatprep.subr.mxu0 0.0
    %811 = vmatpush2.msra.mxu0 0.0
    %812 = vmatprep.subr.mxu0 0.0
    %813 = vmatpush2.msra.mxu0 0.0
    %814 = vmatprep.subr.mxu0 0.0
    %815 = vmatpush2.msra.mxu0 0.0
    %816 = vmatprep.subr.mxu0 0.0
    %817 = vmatpush2.msra.mxu0 0.0
    %818 = vmatprep.subr.mxu0 0.0
    %819 = vmatpush2.msra.mxu0 0.0
    %820 = vmatprep.subr.mxu0 0.0
    %821 = vmatpush2.msra.mxu0 0.0
    %822 = vmatprep.subr.mxu0 0.0
    %823 = vmatpush2.msra.mxu0 0.0
    %824 = vmatprep.subr.mxu0 0.0
    %825 = vmatpush2.msra.mxu0 0.0
    %826 = vmatprep.subr.mxu0 0.0
    %827 = vmatpush2.msra.mxu0 0.0
    %828 = vmatprep.mubr.f32.mxu0 0.0
    %829 = vmatmul.mubr.f32.gmra.mxu0 %v738
    %v830 = vpop.f32.mrf.mxu0
    %v831 = vadd.f32 %v762, %v830
    %v832 = vpop.f32.mrf.mxu0
    %833 = vdwg.mxu0
    %vm834 = vcmp.gt.f32.partialorder %v831, 0.0
    %v835 = vmul.f32 %v831, 0.01
    %v836 = vsel %vm834, %v831, %v835
    %837 = vst [vmem:[#allocation8] sm:$0x3] %v836
    // Predicated region
    $region26: #{tpu_custom_call.1} parent=1 // pred_check
      _
    $region27: #{tpu_custom_call.1} parent=1 // pred_check_branch
      %839 = sbr.rel (0) target = $region29
    $region28: #{tpu_custom_call.1} parent=1 // pred_region
      %s841 = ssub.s32 32, 32
      %842 = vsyncadd [#allocation4], %s841
      %s844 = sshll.u32 [#allocation8], 4
      %s845 = int_to_ptr.vmem [resolvable:$true] %s844
      %847 = dma.vmem_to_hbm [thread:$0]  %s845, 32, %s3, [#allocation4]
    $region29: #{tpu_custom_call.1} parent=1 // pred_fallthru
      _
    // Predicated region
    $region30: #{tpu_custom_call.1} parent=1 // pred_check
      _
    $region31: #{tpu_custom_call.1} parent=1 // pred_check_branch
      %849 = sbr.rel (0) target = $region33
    $region32: #{tpu_custom_call.1} parent=1 // pred_region
      %850 = dma.done [#allocation4], 32
    $region33: #{tpu_custom_call.1} parent=1 // pred_fallthru
      _
    %851 = vsyncpa [#allocation3], 1
    %852 = vsyncpa [#allocation6], 1
    %853 = vsyncpa [#allocation4], 1

</llo_original>
